<compile_context>
chip_gen: v6e
topology: v6e:2x2x1
jax: 0.10.0
libtpu: 0.0.40
codegen_flags: <defaults>
</compile_context>

<pallas_src>
import functools

import jax
import jax.numpy as jnp
from jax.experimental import pallas as pl
from jax.experimental.pallas import tpu as pltpu


def _round_up(x, m):
    return ((x + m - 1) // m) * m


def ste_dina_kernel(theta_t_ref, sg_ref, user_ref, item_ref, know_ref, out_ref,
                    *, max_slip, max_guess):
    """One lane-tile (TB batch elements on the lane axis).

    theta_t_ref : (H, U_pad)  f32  whole theta embedding table, transposed
    sg_ref      : (I_pad, 8)  f32  col 0 = slip logits, col 1 = guess logits
    user_ref    : (1, TB)     i32  user ids for this tile
    item_ref    : (1, TB)     i32  item ids for this tile
    know_ref    : (H, TB)     f32  knowledge, batch on lanes
    out_ref     : (1, TB)     f32
    """
    H = know_ref.shape[0]
    U_pad = theta_t_ref.shape[1]
    I_pad = sg_ref.shape[0]
    TB = out_ref.shape[1]

    # ---- theta gather: one-hot matmul on the MXU -------------------------
    # Only the sign of the gathered value is used below, and a one-hot matmul
    # preserves sign at any MXU precision, so this is exact for our purposes.
    uid = user_ref[...]                                                   # (1, TB)
    u_onehot = (jax.lax.broadcasted_iota(jnp.int32, (U_pad, TB), 0) == uid)
    theta_g = jnp.dot(theta_t_ref[...], u_onehot.astype(jnp.float32),
                      preferred_element_type=jnp.float32)                 # (H, TB)
    theta_bin = (theta_g > 0).astype(jnp.float32)                         # STE sign

    # ---- DINA mask and n --------------------------------------------------
    know = know_ref[...]                                                  # (H, TB)
    mask_theta = ((know == 0).astype(jnp.float32)
                  + (know == 1).astype(jnp.float32) * theta_bin)          # in {0,1}
    # prod((mask+1)/2, axis=H) == exp2(sum(mask) - H) exactly since mask in
    # {0,1}: a VPU/XLU sublane sum + ONE exp2 per element (no per-element log2).
    n = jnp.exp2(jnp.sum(mask_theta, axis=0, keepdims=True) - float(H))   # (1, TB)

    # ---- slip/guess gather: exact one-hot select on the VPU ---------------
    iid = item_ref[...]                                                   # (1, TB)
    i_onehot = (jax.lax.broadcasted_iota(jnp.int32, (I_pad, TB), 0) == iid)
    i_onehot = i_onehot.astype(jnp.float32)                               # (I_pad, TB)
    sg = sg_ref[...]                                                      # (I_pad, 8)
    slip_logit = jnp.sum(i_onehot * sg[:, 0:1], axis=0, keepdims=True)    # (1, TB)
    guess_logit = jnp.sum(i_onehot * sg[:, 1:2], axis=0, keepdims=True)   # (1, TB)
    slip = jax.nn.sigmoid(slip_logit) * max_slip                          # in (0, 0.4)
    guess = jax.nn.sigmoid(guess_logit) * max_guess                       # in (0, 0.4)

    # (1 - slip)^n * guess^(1 - n); bases strictly positive -> one fused exp.
    out_ref[...] = jnp.exp(n * jnp.log(1.0 - slip) + (1.0 - n) * jnp.log(guess))


def ste_dina_forward(user, item, knowledge, theta_table, slip_table, guess_table,
                     *, max_slip=0.4, max_guess=0.4, tb=512):
    """user, item: (B,) int; knowledge: (B, H); returns (B,) float32."""
    B = user.shape[0]
    U, H = theta_table.shape
    I = slip_table.shape[0]

    # Lane tile: multiple of 128; keep >=2 grid steps when B > 128 so the
    # "parallel" batch axis can be split across both v7x TensorCores.
    tb = max(128, (int(tb) // 128) * 128)
    if B > 128:
        tb = min(tb, max(128, ((B - 1) // 128) * 128))
    B_pad = pl.cdiv(B, tb) * tb
    U_pad = _round_up(U, 128)
    I_pad = _round_up(I, 128)

    # Layout plumbing (parameter-sized tables + lane-dense batch slabs).
    know_t = jnp.zeros((H, B_pad), jnp.float32)
    know_t = know_t.at[:, :B].set(jnp.asarray(knowledge, jnp.float32).T)
    user_p = jnp.zeros((1, B_pad), jnp.int32).at[0, :B].set(jnp.asarray(user, jnp.int32))
    item_p = jnp.zeros((1, B_pad), jnp.int32).at[0, :B].set(jnp.asarray(item, jnp.int32))

    theta_t = jnp.zeros((H, U_pad), jnp.float32)
    theta_t = theta_t.at[:, :U].set(jnp.asarray(theta_table, jnp.float32).T)
    sg_tbl = jnp.zeros((I_pad, 8), jnp.float32)
    sg_tbl = sg_tbl.at[:I, 0].set(jnp.asarray(slip_table, jnp.float32)[:, 0])
    sg_tbl = sg_tbl.at[:I, 1].set(jnp.asarray(guess_table, jnp.float32)[:, 0])

    kernel = functools.partial(ste_dina_kernel, max_slip=max_slip, max_guess=max_guess)
    out = pl.pallas_call(
        kernel,
        out_shape=jax.ShapeDtypeStruct((1, B_pad), jnp.float32),
        grid_spec=pltpu.PrefetchScalarGridSpec(
            num_scalar_prefetch=0,
            grid=(B_pad // tb,),
            in_specs=[
                pl.BlockSpec((H, U_pad), lambda i: (0, 0)),   # theta table (whole, VMEM)
                pl.BlockSpec((I_pad, 8), lambda i: (0, 0)),   # packed slip/guess table
                pl.BlockSpec((1, tb), lambda i: (0, i)),      # user ids
                pl.BlockSpec((1, tb), lambda i: (0, i)),      # item ids
                pl.BlockSpec((H, tb), lambda i: (0, i)),      # knowledge (lane-dense)
            ],
            out_specs=pl.BlockSpec((1, tb), lambda i: (0, i)),
        ),
        compiler_params=pltpu.CompilerParams(dimension_semantics=("parallel",)),
    )(theta_t, sg_tbl, user_p, item_p, know_t)
    return out[0, :B]


def ref_forward(user, item, knowledge, theta_table, slip_table, guess_table,
                max_slip=0.4, max_guess=0.4):
    """Pure-JAX reference mirroring the PyTorch module (eval branch)."""
    theta = (theta_table[user] > 0).astype(jnp.float32)
    slip = jax.nn.sigmoid(slip_table[item][:, 0]) * max_slip
    guess = jax.nn.sigmoid(guess_table[item][:, 0]) * max_guess
    knowledge = jnp.asarray(knowledge, jnp.float32)
    mask_theta = (knowledge == 0).astype(jnp.float32) + (knowledge == 1).astype(jnp.float32) * theta
    n = jnp.prod((mask_theta + 1.0) / 2.0, axis=-1)
    return (1.0 - slip) ** n * guess ** (1.0 - n)


if __name__ == "__main__":
    key = jax.random.PRNGKey(0)
    user_num, item_num, hidden_dim = 32, 20, 32
    B = 300  # deliberately not a multiple of 128 to exercise lane padding

    k1, k2, k3, k4, k5, k6 = jax.random.split(key, 6)
    # Deterministic parameter init (nn.Embedding default ~ N(0, 1)).
    theta_table = jax.random.normal(k1, (user_num, hidden_dim), jnp.float32)
    slip_table = jax.random.normal(k2, (item_num, 1), jnp.float32)
    guess_table = jax.random.normal(k3, (item_num, 1), jnp.float32)

    user = jax.random.randint(k4, (B,), 0, user_num, dtype=jnp.int32)
    item = jax.random.randint(k5, (B,), 0, item_num, dtype=jnp.int32)
    knowledge = jax.random.bernoulli(k6, 0.5, (B, hidden_dim)).astype(jnp.float32)

    out = ste_dina_forward(user, item, knowledge, theta_table, slip_table, guess_table)
    out = jax.block_until_ready(out)

    ref = ref_forward(user, item, knowledge, theta_table, slip_table, guess_table)
    assert out.shape == (B,)
    assert jnp.allclose(out, ref, rtol=1e-4, atol=1e-6), (out, ref)

    print("KERNEL_OK")
</pallas_src>

<mosaic_0001>
module attributes {stable_mosaic.version = 11 : i64} {
  func.func @ste_dina_kernel(%arg0: i32, %arg1: memref<32x128xf32, #tpu.memory_space<vmem>>, %arg2: memref<128x8xf32, #tpu.memory_space<vmem>>, %arg3: memref<1x256xi32, #tpu.memory_space<vmem>>, %arg4: memref<1x256xi32, #tpu.memory_space<vmem>>, %arg5: memref<32x256xf32, #tpu.memory_space<vmem>>, %arg6: memref<1x256xf32, #tpu.memory_space<vmem>>) attributes {dimension_semantics = [#tpu.dimension_semantics<parallel>], iteration_bounds = array<i64: 2>, scalar_prefetch = 0 : i64, scratch_operands = 0 : i64, tpu.core_type = #tpu.core_type<tc>, window_params = [{pipeline_mode = #tpu.pipeline_mode<synchronous>, transform_indices = @transform_0, window_bounds = array<i64: 32, 128>}, {pipeline_mode = #tpu.pipeline_mode<synchronous>, transform_indices = @transform_1, window_bounds = array<i64: 128, 8>}, {transform_indices = @transform_2, window_bounds = array<i64: 1, 256>}, {transform_indices = @transform_3, window_bounds = array<i64: 1, 256>}, {transform_indices = @transform_4, window_bounds = array<i64: 32, 256>}, {transform_indices = @transform_5, window_bounds = array<i64: 1, 256>}]} {
    %c0 = arith.constant 0 : index
    %c0_0 = arith.constant 0 : index
    %0 = vector.load %arg3[%c0, %c0_0] : memref<1x256xi32, #tpu.memory_space<vmem>>, vector<1x256xi32>
    %1 = tpu.iota {dimensions = array<i32: 0>} : vector<128x256xi32>
    %2 = vector.broadcast %0 : vector<1x256xi32> to vector<128x256xi32>
    %3 = arith.cmpi eq, %1, %2 : vector<128x256xi32>
    %c0_1 = arith.constant 0 : index
    %c0_2 = arith.constant 0 : index
    %4 = vector.load %arg1[%c0_1, %c0_2] : memref<32x128xf32, #tpu.memory_space<vmem>>, vector<32x128xf32>
    %5 = arith.extui %3 : vector<128x256xi1> to vector<128x256xi32>
    %6 = arith.sitofp %5 : vector<128x256xi32> to vector<128x256xf32>
    %cst = arith.constant dense<0.000000e+00> : vector<32x256xf32>
    %7 = tpu.matmul %4, %6, %cst {dimension_numbers = #tpu.dot_dimension_numbers<[1], [0], [0], [1], [0, 0, 1, 1], [], []>} : vector<32x128xf32>, vector<128x256xf32>, vector<32x256xf32> -> vector<32x256xf32>
    %cst_3 = arith.constant 0.000000e+00 : f32
    %8 = vector.broadcast %cst_3 : f32 to vector<32x256xf32>
    %9 = arith.cmpf ogt, %7, %8 : vector<32x256xf32>
    %10 = arith.extui %9 : vector<32x256xi1> to vector<32x256xi32>
    %11 = arith.sitofp %10 : vector<32x256xi32> to vector<32x256xf32>
    %c0_4 = arith.constant 0 : index
    %c0_5 = arith.constant 0 : index
    %12 = vector.load %arg5[%c0_4, %c0_5] : memref<32x256xf32, #tpu.memory_space<vmem>>, vector<32x256xf32>
    %cst_6 = arith.constant 0.000000e+00 : f32
    %13 = vector.broadcast %cst_6 : f32 to vector<32x256xf32>
    %14 = arith.cmpf oeq, %12, %13 : vector<32x256xf32>
    %15 = arith.extui %14 : vector<32x256xi1> to vector<32x256xi32>
    %16 = arith.sitofp %15 : vector<32x256xi32> to vector<32x256xf32>
    %cst_7 = arith.constant 1.000000e+00 : f32
    %17 = vector.broadcast %cst_7 : f32 to vector<32x256xf32>
    %18 = arith.cmpf oeq, %12, %17 : vector<32x256xf32>
    %19 = arith.extui %18 : vector<32x256xi1> to vector<32x256xi32>
    %20 = arith.sitofp %19 : vector<32x256xi32> to vector<32x256xf32>
    %21 = arith.mulf %20, %11 : vector<32x256xf32>
    %22 = arith.addf %16, %21 : vector<32x256xf32>
    %cst_8 = arith.constant dense<0.000000e+00> : vector<256xf32>
    %23 = vector.multi_reduction <add>, %22, %cst_8 [0] : vector<32x256xf32> to vector<256xf32>
    %24 = vector.shape_cast %23 : vector<256xf32> to vector<1x256xf32>
    %cst_9 = arith.constant 3.200000e+01 : f32
    %25 = vector.broadcast %cst_9 : f32 to vector<1x256xf32>
    %26 = arith.subf %24, %25 : vector<1x256xf32>
    %27 = math.exp2 %26 : vector<1x256xf32>
    %c0_10 = arith.constant 0 : index
    %c0_11 = arith.constant 0 : index
    %28 = vector.load %arg4[%c0_10, %c0_11] : memref<1x256xi32, #tpu.memory_space<vmem>>, vector<1x256xi32>
    %29 = tpu.iota {dimensions = array<i32: 0>} : vector<128x256xi32>
    %30 = vector.broadcast %28 : vector<1x256xi32> to vector<128x256xi32>
    %31 = arith.cmpi eq, %29, %30 : vector<128x256xi32>
    %32 = arith.extui %31 : vector<128x256xi1> to vector<128x256xi32>
    %33 = arith.sitofp %32 : vector<128x256xi32> to vector<128x256xf32>
    %c0_12 = arith.constant 0 : index
    %c0_13 = arith.constant 0 : index
    %34 = vector.load %arg2[%c0_12, %c0_13] : memref<128x8xf32, #tpu.memory_space<vmem>>, vector<128x8xf32>
    %35 = vector.extract_strided_slice %34 {offsets = [0, 0], sizes = [128, 1], strides = [1, 1]} : vector<128x8xf32> to vector<128x1xf32>
    %36 = vector.broadcast %35 : vector<128x1xf32> to vector<128x256xf32>
    %37 = arith.mulf %33, %36 : vector<128x256xf32>
    %cst_14 = arith.constant dense<0.000000e+00> : vector<256xf32>
    %38 = vector.multi_reduction <add>, %37, %cst_14 [0] : vector<128x256xf32> to vector<256xf32>
    %39 = vector.shape_cast %38 : vector<256xf32> to vector<1x256xf32>
    %40 = vector.extract_strided_slice %34 {offsets = [0, 1], sizes = [128, 1], strides = [1, 1]} : vector<128x8xf32> to vector<128x1xf32>
    %41 = vector.broadcast %40 : vector<128x1xf32> to vector<128x256xf32>
    %42 = arith.mulf %33, %41 : vector<128x256xf32>
    %cst_15 = arith.constant dense<0.000000e+00> : vector<256xf32>
    %43 = vector.multi_reduction <add>, %42, %cst_15 [0] : vector<128x256xf32> to vector<256xf32>
    %44 = vector.shape_cast %43 : vector<256xf32> to vector<1x256xf32>
    %45 = arith.negf %39 : vector<1x256xf32>
    %46 = math.exp %45 : vector<1x256xf32>
    %cst_16 = arith.constant 1.000000e+00 : f32
    %47 = vector.broadcast %cst_16 : f32 to vector<1x256xf32>
    %48 = arith.addf %47, %46 : vector<1x256xf32>
    %49 = arith.divf %47, %48 : vector<1x256xf32>
    %cst_17 = arith.constant 4.000000e-01 : f32
    %50 = vector.broadcast %cst_17 : f32 to vector<1x256xf32>
    %51 = arith.mulf %49, %50 : vector<1x256xf32>
    %52 = arith.negf %44 : vector<1x256xf32>
    %53 = math.exp %52 : vector<1x256xf32>
    %cst_18 = arith.constant 1.000000e+00 : f32
    %54 = vector.broadcast %cst_18 : f32 to vector<1x256xf32>
    %55 = arith.addf %54, %53 : vector<1x256xf32>
    %56 = arith.divf %54, %55 : vector<1x256xf32>
    %cst_19 = arith.constant 4.000000e-01 : f32
    %57 = vector.broadcast %cst_19 : f32 to vector<1x256xf32>
    %58 = arith.mulf %56, %57 : vector<1x256xf32>
    %cst_20 = arith.constant 1.000000e+00 : f32
    %59 = vector.broadcast %cst_20 : f32 to vector<1x256xf32>
    %60 = arith.subf %59, %51 : vector<1x256xf32>
    %61 = math.log %60 : vector<1x256xf32>
    %62 = arith.mulf %27, %61 : vector<1x256xf32>
    %cst_21 = arith.constant 1.000000e+00 : f32
    %63 = vector.broadcast %cst_21 : f32 to vector<1x256xf32>
    %64 = arith.subf %63, %27 : vector<1x256xf32>
    %65 = math.log %58 : vector<1x256xf32>
    %66 = arith.mulf %64, %65 : vector<1x256xf32>
    %67 = arith.addf %62, %66 : vector<1x256xf32>
    %68 = math.exp %67 : vector<1x256xf32>
    %c0_22 = arith.constant 0 : index
    %c0_23 = arith.constant 0 : index
    %69 = vector.load %arg6[%c0_22, %c0_23] : memref<1x256xf32, #tpu.memory_space<vmem>>, vector<1x256xf32>
    tpu.vector_store %arg6[%c0_22, %c0_23], %68 {strides = array<i32>} : memref<1x256xf32, #tpu.memory_space<vmem>>, vector<1x256xf32>,
    return
  }
  func.func @transform_0(%arg0: i32) -> (i32, i32) {
    %c0_i32 = arith.constant 0 : i32
    %c0_i32_0 = arith.constant 0 : i32
    %c0_i32_1 = arith.constant 0 : i32
    return %c0_i32, %c0_i32_0 : i32, i32
  }
  func.func @transform_1(%arg0: i32) -> (i32, i32) {
    %c0_i32 = arith.constant 0 : i32
    %c0_i32_0 = arith.constant 0 : i32
    %c0_i32_1 = arith.constant 0 : i32
    return %c0_i32, %c0_i32_0 : i32, i32
  }
  func.func @transform_2(%arg0: i32) -> (i32, i32) {
    %c0_i32 = arith.constant 0 : i32
    %c0_i32_0 = arith.constant 0 : i32
    return %c0_i32, %arg0 : i32, i32
  }
  func.func @transform_3(%arg0: i32) -> (i32, i32) {
    %c0_i32 = arith.constant 0 : i32
    %c0_i32_0 = arith.constant 0 : i32
    return %c0_i32, %arg0 : i32, i32
  }
  func.func @transform_4(%arg0: i32) -> (i32, i32) {
    %c0_i32 = arith.constant 0 : i32
    %c0_i32_0 = arith.constant 0 : i32
    return %c0_i32, %arg0 : i32, i32
  }
  func.func @transform_5(%arg0: i32) -> (i32, i32) {
    %c0_i32 = arith.constant 0 : i32
    %c0_i32_0 = arith.constant 0 : i32
    return %c0_i32, %arg0 : i32, i32
  }
}

</mosaic_0001>

<llo_original>
// kernel: tpu_custom_call.1
$region0: #{tpu_custom_call.1}
  #allocation0 [shape = 'u32[]', space=smem, size = 0x4, offset = 0x4, fixed_abs, tag = 'smem constant byte address 0x4 - core index']
  #allocation1 [shape = 'u32[144,128]{1,0:T(1,128)}', space=vmem, size = 0x12000, scoped, tag = 'internal scratch']
  %s0 = inlined_call_operand.hbm [shape: f32[32,128], index: 0, kind: input, shape index: {}]
  %s1 = inlined_call_operand.vmem [shape: f32[128,8], index: 1, kind: input, shape index: {}]
  %s2 = inlined_call_operand.vmem [shape: s32[1,512], index: 2, kind: input, shape index: {}]
  %s3 = inlined_call_operand.vmem [shape: s32[1,512], index: 3, kind: input, shape index: {}]
  %s4 = inlined_call_operand.vmem [shape: f32[32,512], index: 4, kind: input, shape index: {}]
  %s5 = inlined_call_operand.hbm [shape: f32[1,512], index: 5, kind: output, shape index: {}]
  %s6 = sld [smem:[#allocation0]]
  $region80: #{tpu_custom_call.1} parent=0
    _
  %s8 = ssub.s32 1, %s6
  %s9 = scalar_select 0, %s8, %s6
  $region1: #{tpu_custom_call.1} parent=0
    #allocation2 [shape = 'u8[16384]{0}', space=vmem, size = 0x4000, scoped, tag = 'input window, operand 0, single buffered']
    #allocation3 [shape = 's32[2]{0}', space=sflag, size = 0x8, scoped, tag = 'scoped memory for tpu_custom_call.1']
    #allocation4 [shape = 's32[2]{0}', space=sflag, size = 0x8, scoped, tag = 'scoped memory for tpu_custom_call.1']
    #allocation5 [shape = 'u8[65536]{0}', space=vmem, size = 0x10000, scoped, tag = 'input window, operand 4']
    #allocation6 [shape = 'u8[2048]{0}', space=vmem, size = 0x800, scoped, tag = 'output window, operand 0']
    %10 = vsyncpa [#allocation3], 0
    %11 = vsyncpa [#allocation4], 0
    %s12 = scalar_lea.sflag [#allocation4], 1
    %13 = vsyncpa %s12, 0
    loop: start=0, step=1, limit=4
    $region2: #{tpu_custom_call.1} parent=1 // loop_pre_header
      _
    $region3: #{tpu_custom_call.1} parent=1 // loop_header
      %s15 = sphi 0, %s19
      %p16 = scmp.ge.s32.totalorder %s15, 4
      %s23 = sphi 0, %s23
      %s25 = sphi 0, %s23
      %s26 = sphi 0, %s25
      %s40 = sphi 0, %s26
      %s44 = sphi 0, %s44
      %s46 = sphi 0, %s44
      %s47 = sphi 0, %s46
      %s61 = sphi 0, %s47
      %s67 = sphi 0, %s69
      %s70 = sphi 0, %s67
      %s71 = sphi 0, %s70
      %s87 = sphi 0, %s71
      %s93 = sphi 0, %s95
      %s96 = sphi 0, %s93
      %s97 = sphi 0, %s96
      %s113 = sphi 0, %s97
      %s119 = sphi 0, %s121
      %s122 = sphi 0, %s119
      %s123 = sphi 0, %s122
      %s139 = sphi 0, %s123
      %s145 = sphi 0, %s147
      %s148 = sphi 0, %s145
      %s149 = sphi 0, %s148
      %s165 = sphi 0, %s149
    $region4: #{tpu_custom_call.1} parent=1 // loop_header_branch
      %18 = sbr.rel (%p16) target = $region8
    $region5: #{tpu_custom_call.1} parent=1 // loop_body
      %s20 = ssub.s32 %s15, 1
      %s21 = ssub.s32 %s15, 2
      %s22 = sadd.s32 %s15, 1
      %s24 = sadd.s32 %s23, 1
      %p27 = scmp.eq.s32.totalorder %s15, 1
      %p28 = scmp.ne.s32.totalorder %s23, %s25
      %p29 = scmp.eq.s32.totalorder %s15, 0
      %p30 = por %p28, %p29
      %p31 = scmp.ne.s32.totalorder %s23, %s25
      %p32 = scmp.eq.s32.totalorder %s20, 1
      %p33 = por %p31, %p32
      %p34 = scmp.ne.s32.totalorder %s25, %s26
      %p35 = scmp.eq.s32.totalorder %s20, 0
      %p36 = por %p34, %p35
      %p37 = scmp.ne.s32.totalorder %s25, %s26
      %p38 = scmp.eq.s32.totalorder %s21, 1
      %p39 = por %p37, %p38
      %p41 = scmp.ne.s32.totalorder %s26, %s40
      %p42 = scmp.eq.s32.totalorder %s21, 0
      %p43 = por %p41, %p42
      %s45 = sadd.s32 %s44, 1
      %p48 = scmp.eq.s32.totalorder %s15, 1
      %p49 = scmp.ne.s32.totalorder %s44, %s46
      %p50 = scmp.eq.s32.totalorder %s15, 0
      %p51 = por %p49, %p50
      %p52 = scmp.ne.s32.totalorder %s44, %s46
      %p53 = scmp.eq.s32.totalorder %s20, 1
      %p54 = por %p52, %p53
      %p55 = scmp.ne.s32.totalorder %s46, %s47
      %p56 = scmp.eq.s32.totalorder %s20, 0
      %p57 = por %p55, %p56
      %p58 = scmp.ne.s32.totalorder %s46, %s47
      %p59 = scmp.eq.s32.totalorder %s21, 1
      %p60 = por %p58, %p59
      %p62 = scmp.ne.s32.totalorder %s47, %s61
      %p63 = scmp.eq.s32.totalorder %s21, 0
      %p64 = por %p62, %p63
      %s65 = ssub.s32 %s15, %s22
      %p66 = scmp.eq.s32.totalorder %s65, 0
      %s68 = sadd.s32 %s67, 1
      %s69 = scalar_select %p66, %s67, %s68
      %p72 = pneg %p66
      %p73 = scmp.eq.s32.totalorder %s15, 1
      %p74 = por %p72, %p73
      %p75 = scmp.ne.s32.totalorder %s67, %s70
      %p76 = scmp.eq.s32.totalorder %s15, 0
      %p77 = por %p75, %p76
      %p78 = scmp.ne.s32.totalorder %s67, %s70
      %p79 = scmp.eq.s32.totalorder %s20, 1
      %p80 = por %p78, %p79
      %p81 = scmp.ne.s32.totalorder %s70, %s71
      %p82 = scmp.eq.s32.totalorder %s20, 0
      %p83 = por %p81, %p82
      %p84 = scmp.ne.s32.totalorder %s70, %s71
      %p85 = scmp.eq.s32.totalorder %s21, 1
      %p86 = por %p84, %p85
      %p88 = scmp.ne.s32.totalorder %s71, %s87
      %p89 = scmp.eq.s32.totalorder %s21, 0
      %p90 = por %p88, %p89
      %s91 = ssub.s32 %s15, %s22
      %p92 = scmp.eq.s32.totalorder %s91, 0
      %s94 = sadd.s32 %s93, 1
      %s95 = scalar_select %p92, %s93, %s94
      %p98 = pneg %p92
      %p99 = scmp.eq.s32.totalorder %s15, 1
      %p100 = por %p98, %p99
      %p101 = scmp.ne.s32.totalorder %s93, %s96
      %p102 = scmp.eq.s32.totalorder %s15, 0
      %p103 = por %p101, %p102
      %p104 = scmp.ne.s32.totalorder %s93, %s96
      %p105 = scmp.eq.s32.totalorder %s20, 1
      %p106 = por %p104, %p105
      %p107 = scmp.ne.s32.totalorder %s96, %s97
      %p108 = scmp.eq.s32.totalorder %s20, 0
      %p109 = por %p107, %p108
      %p110 = scmp.ne.s32.totalorder %s96, %s97
      %p111 = scmp.eq.s32.totalorder %s21, 1
      %p112 = por %p110, %p111
      %p114 = scmp.ne.s32.totalorder %s97, %s113
      %p115 = scmp.eq.s32.totalorder %s21, 0
      %p116 = por %p114, %p115
      %s117 = ssub.s32 %s15, %s22
      %p118 = scmp.eq.s32.totalorder %s117, 0
      %s120 = sadd.s32 %s119, 1
      %s121 = scalar_select %p118, %s119, %s120
      %p124 = pneg %p118
      %p125 = scmp.eq.s32.totalorder %s15, 1
      %p126 = por %p124, %p125
      %p127 = scmp.ne.s32.totalorder %s119, %s122
      %p128 = scmp.eq.s32.totalorder %s15, 0
      %p129 = por %p127, %p128
      %p130 = scmp.ne.s32.totalorder %s119, %s122
      %p131 = scmp.eq.s32.totalorder %s20, 1
      %p132 = por %p130, %p131
      %p133 = scmp.ne.s32.totalorder %s122, %s123
      %p134 = scmp.eq.s32.totalorder %s20, 0
      %p135 = por %p133, %p134
      %p136 = scmp.ne.s32.totalorder %s122, %s123
      %p137 = scmp.eq.s32.totalorder %s21, 1
      %p138 = por %p136, %p137
      %p140 = scmp.ne.s32.totalorder %s123, %s139
      %p141 = scmp.eq.s32.totalorder %s21, 0
      %p142 = por %p140, %p141
      %s143 = ssub.s32 %s15, %s22
      %p144 = scmp.eq.s32.totalorder %s143, 0
      %s146 = sadd.s32 %s145, 1
      %s147 = scalar_select %p144, %s145, %s146
      %p150 = pneg %p144
      %p151 = scmp.eq.s32.totalorder %s15, 1
      %p152 = por %p150, %p151
      %p153 = scmp.ne.s32.totalorder %s145, %s148
      %p154 = scmp.eq.s32.totalorder %s15, 0
      %p155 = por %p153, %p154
      %p156 = scmp.ne.s32.totalorder %s145, %s148
      %p157 = scmp.eq.s32.totalorder %s20, 1
      %p158 = por %p156, %p157
      %p159 = scmp.ne.s32.totalorder %s148, %s149
      %p160 = scmp.eq.s32.totalorder %s20, 0
      %p161 = por %p159, %p160
      %p162 = scmp.ne.s32.totalorder %s148, %s149
      %p163 = scmp.eq.s32.totalorder %s21, 1
      %p164 = por %p162, %p163
      %p166 = scmp.ne.s32.totalorder %s149, %s165
      %p167 = scmp.eq.s32.totalorder %s21, 0
      %p168 = por %p166, %p167
      %p169 = scmp.le.s32.totalorder 1, %s15
      %p170 = scmp.lt.s32.totalorder %s15, 3
      %p171 = pnand %p169, %p170
      %p172 = pneg %p171
      // Predicated region
      $region9: #{tpu_custom_call.1} parent=5 // pred_check
        _
      $region10: #{tpu_custom_call.1} parent=5 // pred_check_branch
        %174 = sbr.rel (%p171) target = $region12
      $region11: #{tpu_custom_call.1} parent=5 // pred_region
        %s175 = ssub.s32 %s15, 1
        // Predicated region
        $region13: #{tpu_custom_call.1} parent=11 // pred_check
          %p176 = pneg %p36
        $region14: #{tpu_custom_call.1} parent=11 // pred_check_branch
          %178 = sbr.rel (%p176) target = $region16
        $region15: #{tpu_custom_call.1} parent=11 // pred_region
          %s180 = ssub.s32 512, 512
          %181 = vsyncadd [#allocation3], %s180
          %s182 = sshll.u32 [#allocation2], 4
          %s183 = int_to_ptr.vmem [resolvable:$true] %s182
          %188 = dma.hbm_to_vmem [thread:$0]  %s0, 512, %s183, [#allocation3], 128, 128, 8
        $region16: #{tpu_custom_call.1} parent=11 // pred_fallthru
          _
        // Predicated region
        $region17: #{tpu_custom_call.1} parent=11 // pred_check
          %p189 = pneg %p57
        $region18: #{tpu_custom_call.1} parent=11 // pred_check_branch
          %191 = sbr.rel (%p189) target = $region20
        $region19: #{tpu_custom_call.1} parent=11 // pred_region
          _
        $region20: #{tpu_custom_call.1} parent=11 // pred_fallthru
          _
      $region12: #{tpu_custom_call.1} parent=5 // pred_fallthru
        _
      %p192 = scmp.lt.s32.totalorder %s15, 2
      // Predicated region
      $region21: #{tpu_custom_call.1} parent=5 // pred_check
        %p193 = pneg %p192
      $region22: #{tpu_custom_call.1} parent=5 // pred_check_branch
        %195 = sbr.rel (%p193) target = $region24
      $region23: #{tpu_custom_call.1} parent=5 // pred_region
        // Predicated region
        $region25: #{tpu_custom_call.1} parent=23 // pred_check
          %p196 = pneg %p77
        $region26: #{tpu_custom_call.1} parent=23 // pred_check_branch
          %198 = sbr.rel (%p196) target = $region28
        $region27: #{tpu_custom_call.1} parent=23 // pred_region
          %s199 = smul.u32 2, %s15
          %p200 = scmp.lt.s32.totalorder %s199, 3
          %s201 = scalar_select %p200, %s199, 3
          %s202 = scalar_lea.vmem %s2, %s201
          %s203 = smul.u32 2, %s15
        $region28: #{tpu_custom_call.1} parent=23 // pred_fallthru
          _
        // Predicated region
        $region29: #{tpu_custom_call.1} parent=23 // pred_check
          %p204 = pneg %p103
        $region30: #{tpu_custom_call.1} parent=23 // pred_check_branch
          %206 = sbr.rel (%p204) target = $region32
        $region31: #{tpu_custom_call.1} parent=23 // pred_region
          %s207 = smul.u32 2, %s15
          %p208 = scmp.lt.s32.totalorder %s207, 3
          %s209 = scalar_select %p208, %s207, 3
          %s210 = scalar_lea.vmem %s3, %s209
          %s211 = smul.u32 2, %s15
        $region32: #{tpu_custom_call.1} parent=23 // pred_fallthru
          _
        // Predicated region
        $region33: #{tpu_custom_call.1} parent=23 // pred_check
          %p212 = pneg %p129
        $region34: #{tpu_custom_call.1} parent=23 // pred_check_branch
          %214 = sbr.rel (%p212) target = $region36
        $region35: #{tpu_custom_call.1} parent=23 // pred_region
          %s215 = sand.u32 %s119, 1
          %s216 = sand.u32 %s119, 1
          %s217 = smul.addr %s216, 64
          %s218 = scalar_lea.vmem [#allocation5], %s217
          %s219 = smul.u32 2, %s15
          %s220 = smul.addr %s219, 8
          %s221 = scalar_lea.vmem %s4, %s220
          // Predicated region
          $region37: #{tpu_custom_call.1} parent=35 // pred_check
            _
          $region38: #{tpu_custom_call.1} parent=35 // pred_check_branch
            %223 = sbr.rel (0) target = $region40
          $region39: #{tpu_custom_call.1} parent=35 // pred_region
            // Predicated region
            $region41: #{tpu_custom_call.1} parent=39 // pred_check
              _
            $region42: #{tpu_custom_call.1} parent=39 // pred_check_branch
              %225 = sbr.rel (0) target = $region44
            $region43: #{tpu_custom_call.1} parent=39 // pred_region
              loop: start=0, step=1, limit=1
              $region45: #{tpu_custom_call.1} parent=43 // loop_pre_header
                _
              $region46: #{tpu_custom_call.1} parent=43 // loop_header
                %s227 = sphi 0, %s231
                %p228 = scmp.ge.s32.totalorder %s227, 1
                %s232 = sphi %s221, %s221
                %s233 = sphi %s218, %s218
              $region47: #{tpu_custom_call.1} parent=43 // loop_header_branch
                %230 = sbr.rel (%p228) target = $region51
              $region48: #{tpu_custom_call.1} parent=43 // loop_body
                %v234 = vld [vmem:[%s232] sm:$0xff]
                %235 = vst [vmem:[%s233] sm:$0xff] %v234
                %v236 = vld [vmem:[%s232 + $0x8] sm:$0xff]
                %237 = vst [vmem:[%s233 + $0x8] sm:$0xff] %v236
                %v238 = vld [vmem:[%s232 + $0x20] sm:$0xff]
                %239 = vst [vmem:[%s233 + $0x10] sm:$0xff] %v238
                %v240 = vld [vmem:[%s232 + $0x28] sm:$0xff]
                %241 = vst [vmem:[%s233 + $0x18] sm:$0xff] %v240
                %v242 = vld [vmem:[%s232 + $0x40] sm:$0xff]
                %243 = vst [vmem:[%s233 + $0x20] sm:$0xff] %v242
                %v244 = vld [vmem:[%s232 + $0x48] sm:$0xff]
                %245 = vst [vmem:[%s233 + $0x28] sm:$0xff] %v244
                %v246 = vld [vmem:[%s232 + $0x60] sm:$0xff]
                %247 = vst [vmem:[%s233 + $0x30] sm:$0xff] %v246
                %v248 = vld [vmem:[%s232 + $0x68] sm:$0xff]
                %249 = vst [vmem:[%s233 + $0x38] sm:$0xff] %v248
              $region49: #{tpu_custom_call.1} parent=43 // loop_footer
                %s231 = sadd.s32 1, %s227
              $region50: #{tpu_custom_call.1} parent=43 // loop_footer_branch
                %226 = sbr.rel target = $region46
              $region51: #{tpu_custom_call.1} parent=43 // loop_exit
                _
            $region44: #{tpu_custom_call.1} parent=39 // pred_fallthru
              _
            // Predicated region
            $region52: #{tpu_custom_call.1} parent=39 // pred_check
              _
            $region53: #{tpu_custom_call.1} parent=39 // pred_check_branch
              %251 = sbr.rel target = $region55
            $region54: #{tpu_custom_call.1} parent=39 // pred_region
              _
            $region55: #{tpu_custom_call.1} parent=39 // pred_fallthru
              _
          $region40: #{tpu_custom_call.1} parent=35 // pred_fallthru
            _
          %252 = vnop
        $region36: #{tpu_custom_call.1} parent=23 // pred_fallthru
          _
      $region24: #{tpu_custom_call.1} parent=5 // pred_fallthru
        _
      %p253 = scmp.le.s32.totalorder 1, %s15
      %p254 = scmp.lt.s32.totalorder %s15, 3
      %p255 = pnand %p253, %p254
      %p256 = pneg %p255
      // Predicated region
      $region56: #{tpu_custom_call.1} parent=5 // pred_check
        _
      $region57: #{tpu_custom_call.1} parent=5 // pred_check_branch
        %258 = sbr.rel (%p255) target = $region59
      $region58: #{tpu_custom_call.1} parent=5 // pred_region
        %s259 = ssub.s32 %s15, 1
        // Predicated region
        $region60: #{tpu_custom_call.1} parent=58 // pred_check
          %p260 = pneg %p36
        $region61: #{tpu_custom_call.1} parent=58 // pred_check_branch
          %262 = sbr.rel (%p260) target = $region63
        $region62: #{tpu_custom_call.1} parent=58 // pred_region
          %263 = dma.done [#allocation3], 512
        $region63: #{tpu_custom_call.1} parent=58 // pred_fallthru
          _
        %s264 = sand.u32 %s122, 1
        %s265 = sand.u32 %s122, 1
        %s266 = smul.addr %s265, 64
        %s267 = scalar_lea.vmem [#allocation5], %s266
        // Predicated region
        $region64: #{tpu_custom_call.1} parent=58 // pred_check
          %p268 = pneg %p135
        $region65: #{tpu_custom_call.1} parent=58 // pred_check_branch
          %270 = sbr.rel (%p268) target = $region67
        $region66: #{tpu_custom_call.1} parent=58 // pred_region
          _
        $region67: #{tpu_custom_call.1} parent=58 // pred_fallthru
          _
        %p271 = pneg %p36
        %p272 = pneg %p33
        %p273 = pneg %p57
        %p274 = pneg %p54
        %s275 = smul.u32 2, %s20
        %p276 = scmp.lt.s32.totalorder %s275, 3
        %s277 = scalar_select %p276, %s275, 3
        %s278 = scalar_lea.vmem %s2, %s277
        %p279 = pneg %p83
        %p280 = pneg %p80
        %s281 = smul.u32 2, %s20
        %p282 = scmp.lt.s32.totalorder %s281, 3
        %s283 = scalar_select %p282, %s281, 3
        %s284 = scalar_lea.vmem %s3, %s283
        %p285 = pneg %p109
        %p286 = pneg %p106
        %s287 = sand.u32 %s122, 1
        %s288 = sand.u32 %s122, 1
        %s289 = smul.addr %s288, 64
        %s290 = scalar_lea.vmem [#allocation5], %s289
        %p291 = pneg %p135
        %p292 = pneg %p132
        %p293 = pneg %p161
        %p294 = pneg %p158
        %s295 = sand.u32 %s148, 1
        %s296 = scalar_lea.sflag [#allocation4], %s295
        %s297 = sand.u32 %s148, 1
        %s298 = smul.addr %s297, 2
        %s299 = scalar_lea.vmem [#allocation6], %s298
        %s300 = smul.u32 2, %s20
        %p301 = scmp.lt.s32.totalorder %s300, 3
        %s302 = scalar_select %p301, %s300, 3
        %s303 = scalar_lea.vmem %s2, %s302
        %s304 = smul.u32 2, %s20
        %s305 = smul.u32 2, %s20
        %p306 = scmp.lt.s32.totalorder %s305, 3
        %s307 = scalar_select %p306, %s305, 3
        %s308 = scalar_lea.vmem %s3, %s307
        %s309 = smul.u32 2, %s20
        %s310 = smul.u32 2, %s20
        %s311 = smul.u32 2, %s20
        %v312 = vld [vmem:[%s303] sm:$0x3]
        %v313 = vlaneseq
        %v314 = vshrl.u32 %v313, 7
        %v315 = vadd.s32 %v314, 8
        %v316 = vadd.s32 %v314, 16
        %v317 = vadd.s32 %v314, 24
        %v318 = vadd.s32 %v314, 32
        %v319 = vadd.s32 %v314, 40
        %v320 = vadd.s32 %v314, 48
        %v321 = vadd.s32 %v314, 56
        %v322 = vadd.s32 %v314, 64
        %v323 = vadd.s32 %v314, 72
        %v324 = vadd.s32 %v314, 80
        %v325 = vadd.s32 %v314, 88
        %v326 = vadd.s32 %v314, 96
        %v327 = vadd.s32 %v314, 104
        %v328 = vadd.s32 %v314, 112
        %v329 = vadd.s32 %v314, 120
        %v330 = vlaneseq
        %v331 = vshrl.u32 %v330, 7
        %v332 = vsub.s32 0, %v331
        %v333 = vrot.slane %v312, %v332
        %v334 = vlaneseq
        %v335 = vshrl.u32 %v334, 7
        %v336 = vsub.s32 1, %v335
        %v337 = vrot.slane %v312, %v336
        %vm338 = vcmp.eq.s32.totalorder %v314, %v333
        %vm339 = vcmp.eq.s32.totalorder %v314, %v337
        %vm340 = vcmp.eq.s32.totalorder %v315, %v333
        %vm341 = vcmp.eq.s32.totalorder %v315, %v337
        %vm342 = vcmp.eq.s32.totalorder %v316, %v333
        %vm343 = vcmp.eq.s32.totalorder %v316, %v337
        %vm344 = vcmp.eq.s32.totalorder %v317, %v333
        %vm345 = vcmp.eq.s32.totalorder %v317, %v337
        %vm346 = vcmp.eq.s32.totalorder %v318, %v333
        %vm347 = vcmp.eq.s32.totalorder %v318, %v337
        %vm348 = vcmp.eq.s32.totalorder %v319, %v333
        %vm349 = vcmp.eq.s32.totalorder %v319, %v337
        %vm350 = vcmp.eq.s32.totalorder %v320, %v333
        %vm351 = vcmp.eq.s32.totalorder %v320, %v337
        %vm352 = vcmp.eq.s32.totalorder %v321, %v333
        %vm353 = vcmp.eq.s32.totalorder %v321, %v337
        %vm354 = vcmp.eq.s32.totalorder %v322, %v333
        %vm355 = vcmp.eq.s32.totalorder %v322, %v337
        %vm356 = vcmp.eq.s32.totalorder %v323, %v333
        %vm357 = vcmp.eq.s32.totalorder %v323, %v337
        %vm358 = vcmp.eq.s32.totalorder %v324, %v333
        %vm359 = vcmp.eq.s32.totalorder %v324, %v337
        %vm360 = vcmp.eq.s32.totalorder %v325, %v333
        %vm361 = vcmp.eq.s32.totalorder %v325, %v337
        %vm362 = vcmp.eq.s32.totalorder %v326, %v333
        %vm363 = vcmp.eq.s32.totalorder %v326, %v337
        %vm364 = vcmp.eq.s32.totalorder %v327, %v333
        %vm365 = vcmp.eq.s32.totalorder %v327, %v337
        %vm366 = vcmp.eq.s32.totalorder %v328, %v333
        %vm367 = vcmp.eq.s32.totalorder %v328, %v337
        %vm368 = vcmp.eq.s32.totalorder %v329, %v333
        %vm369 = vcmp.eq.s32.totalorder %v329, %v337
        %v370 = vld [vmem:[#allocation2] sm:$0xff]
        %v371 = vld [vmem:[#allocation2 + $0x8] sm:$0xff]
        %v372 = vld [vmem:[#allocation2 + $0x10] sm:$0xff]
        %v373 = vld [vmem:[#allocation2 + $0x18] sm:$0xff]
        %v374 = vsel %vm338, 1, 0
        %v375 = vsel %vm339, 1, 0
        %v376 = vsel %vm340, 1, 0
        %v377 = vsel %vm341, 1, 0
        %v378 = vsel %vm342, 1, 0
        %v379 = vsel %vm343, 1, 0
        %v380 = vsel %vm344, 1, 0
        %v381 = vsel %vm345, 1, 0
        %v382 = vsel %vm346, 1, 0
        %v383 = vsel %vm347, 1, 0
        %v384 = vsel %vm348, 1, 0
        %v385 = vsel %vm349, 1, 0
        %v386 = vsel %vm350, 1, 0
        %v387 = vsel %vm351, 1, 0
        %v388 = vsel %vm352, 1, 0
        %v389 = vsel %vm353, 1, 0
        %v390 = vsel %vm354, 1, 0
        %v391 = vsel %vm355, 1, 0
        %v392 = vsel %vm356, 1, 0
        %v393 = vsel %vm357, 1, 0
        %v394 = vsel %vm358, 1, 0
        %v395 = vsel %vm359, 1, 0
        %v396 = vsel %vm360, 1, 0
        %v397 = vsel %vm361, 1, 0
        %v398 = vsel %vm362, 1, 0
        %v399 = vsel %vm363, 1, 0
        %v400 = vsel %vm364, 1, 0
        %v401 = vsel %vm365, 1, 0
        %v402 = vsel %vm366, 1, 0
        %v403 = vsel %vm367, 1, 0
        %v404 = vsel %vm368, 1, 0
        %v405 = vsel %vm369, 1, 0
        %v406 = vcvt.s32.f32 %v374
        %v407 = vcvt.s32.f32 %v375
        %v408 = vcvt.s32.f32 %v376
        %v409 = vcvt.s32.f32 %v377
        %v410 = vcvt.s32.f32 %v378
        %v411 = vcvt.s32.f32 %v379
        %v412 = vcvt.s32.f32 %v380
        %v413 = vcvt.s32.f32 %v381
        %v414 = vcvt.s32.f32 %v382
        %v415 = vcvt.s32.f32 %v383
        %v416 = vcvt.s32.f32 %v384
        %v417 = vcvt.s32.f32 %v385
        %v418 = vcvt.s32.f32 %v386
        %v419 = vcvt.s32.f32 %v387
        %v420 = vcvt.s32.f32 %v388
        %v421 = vcvt.s32.f32 %v389
        %v422 = vcvt.s32.f32 %v390
        %v423 = vcvt.s32.f32 %v391
        %v424 = vcvt.s32.f32 %v392
        %v425 = vcvt.s32.f32 %v393
        %v426 = vcvt.s32.f32 %v394
        %v427 = vcvt.s32.f32 %v395
        %v428 = vcvt.s32.f32 %v396
        %v429 = vcvt.s32.f32 %v397
        %v430 = vcvt.s32.f32 %v398
        %v431 = vcvt.s32.f32 %v399
        %v432 = vcvt.s32.f32 %v400
        %v433 = vcvt.s32.f32 %v401
        %v434 = vcvt.s32.f32 %v402
        %v435 = vcvt.s32.f32 %v403
        %v436 = vcvt.s32.f32 %v404
        %v437 = vcvt.s32.f32 %v405
        %438 = vmatprep.subr.mxu0 %v437
        %439 = vmatpush1.msra.mxu0 %v436
        %440 = vmatprep.subr.mxu0 %v435
        %441 = vmatpush1.msra.mxu0 %v434
        %442 = vmatprep.subr.mxu0 %v433
        %443 = vmatpush1.msra.mxu0 %v432
        %444 = vmatprep.subr.mxu0 %v431
        %445 = vmatpush1.msra.mxu0 %v430
        %446 = vmatprep.subr.mxu0 %v429
        %447 = vmatpush1.msra.mxu0 %v428
        %448 = vmatprep.subr.mxu0 %v427
        %449 = vmatpush1.msra.mxu0 %v426
        %450 = vmatprep.subr.mxu0 %v425
        %451 = vmatpush1.msra.mxu0 %v424
        %452 = vmatprep.subr.mxu0 %v423
        %453 = vmatpush1.msra.mxu0 %v422
        %454 = vmatprep.subr.mxu0 %v421
        %455 = vmatpush1.msra.mxu0 %v420
        %456 = vmatprep.subr.mxu0 %v419
        %457 = vmatpush1.msra.mxu0 %v418
        %458 = vmatprep.subr.mxu0 %v417
        %459 = vmatpush1.msra.mxu0 %v416
        %460 = vmatprep.subr.mxu0 %v415
        %461 = vmatpush1.msra.mxu0 %v414
        %462 = vmatprep.subr.mxu0 %v413
        %463 = vmatpush1.msra.mxu0 %v412
        %464 = vmatprep.subr.mxu0 %v411
        %465 = vmatpush1.msra.mxu0 %v410
        %466 = vmatprep.subr.mxu0 %v409
        %467 = vmatpush1.msra.mxu0 %v408
        %468 = vmatprep.subr.mxu0 %v407
        %469 = vmatpush1.msra.mxu0 %v406
        %470 = vmatprep.subr.mxu0 0.0
        %471 = vmatpush2.msra.mxu0 0.0
        %472 = vmatprep.subr.mxu0 0.0
        %473 = vmatpush2.msra.mxu0 0.0
        %474 = vmatprep.subr.mxu0 0.0
        %475 = vmatpush2.msra.mxu0 0.0
        %476 = vmatprep.subr.mxu0 0.0
        %477 = vmatpush2.msra.mxu0 0.0
        %478 = vmatprep.subr.mxu0 0.0
        %479 = vmatpush2.msra.mxu0 0.0
        %480 = vmatprep.subr.mxu0 0.0
        %481 = vmatpush2.msra.mxu0 0.0
        %482 = vmatprep.subr.mxu0 0.0
        %483 = vmatpush2.msra.mxu0 0.0
        %484 = vmatprep.subr.mxu0 0.0
        %485 = vmatpush2.msra.mxu0 0.0
        %486 = vmatprep.subr.mxu0 0.0
        %487 = vmatpush2.msra.mxu0 0.0
        %488 = vmatprep.subr.mxu0 0.0
        %489 = vmatpush2.msra.mxu0 0.0
        %490 = vmatprep.subr.mxu0 0.0
        %491 = vmatpush2.msra.mxu0 0.0
        %492 = vmatprep.subr.mxu0 0.0
        %493 = vmatpush2.msra.mxu0 0.0
        %494 = vmatprep.subr.mxu0 0.0
        %495 = vmatpush2.msra.mxu0 0.0
        %496 = vmatprep.subr.mxu0 0.0
        %497 = vmatpush2.msra.mxu0 0.0
        %498 = vmatprep.subr.mxu0 0.0
        %499 = vmatpush2.msra.mxu0 0.0
        %500 = vmatprep.subr.mxu0 0.0
        %501 = vmatpush2.msra.mxu0 0.0
        %502 = vmatprep.mubr.f32.mxu0 0.0
        %503 = vmatmul.mubr.f32.gmra.mxu0 %v370
        %v504 = vpop.f32.mrf.mxu0
        %v505 = vadd.f32 0.0, %v504
        %v506 = vpop.f32.mrf.mxu0
        %v507 = vadd.f32 0.0, %v506
        %508 = vmatprep.mubr.f32.mxu0 0.0
        %509 = vmatmul.mubr.f32.gmra.mxu0 %v371
        %v510 = vpop.f32.mrf.mxu0
        %v511 = vadd.f32 0.0, %v510
        %v512 = vpop.f32.mrf.mxu0
        %v513 = vadd.f32 0.0, %v512
        %514 = vmatprep.mubr.f32.mxu0 0.0
        %515 = vmatmul.mubr.f32.gmra.mxu0 %v372
        %v516 = vpop.f32.mrf.mxu0
        %v517 = vadd.f32 0.0, %v516
        %v518 = vpop.f32.mrf.mxu0
        %v519 = vadd.f32 0.0, %v518
        %520 = vmatprep.mubr.f32.mxu0 0.0
        %521 = vmatmul.mubr.f32.gmra.mxu0 %v373
        %v522 = vpop.f32.mrf.mxu0
        %v523 = vadd.f32 0.0, %v522
        %v524 = vpop.f32.mrf.mxu0
        %v525 = vadd.f32 0.0, %v524
        %526 = vdwg.mxu0
        %vm527 = vcmp.gt.f32.partialorder %v505, 0.0
        %vm528 = vcmp.gt.f32.partialorder %v507, 0.0
        %vm529 = vcmp.gt.f32.partialorder %v511, 0.0
        %vm530 = vcmp.gt.f32.partialorder %v513, 0.0
        %vm531 = vcmp.gt.f32.partialorder %v517, 0.0
        %vm532 = vcmp.gt.f32.partialorder %v519, 0.0
        %vm533 = vcmp.gt.f32.partialorder %v523, 0.0
        %vm534 = vcmp.gt.f32.partialorder %v525, 0.0
        %v535 = vsel %vm527, 1, 0
        %v536 = vsel %vm528, 1, 0
        %v537 = vsel %vm529, 1, 0
        %v538 = vsel %vm530, 1, 0
        %v539 = vsel %vm531, 1, 0
        %v540 = vsel %vm532, 1, 0
        %v541 = vsel %vm533, 1, 0
        %v542 = vsel %vm534, 1, 0
        %v543 = vcvt.s32.f32 %v535
        %v544 = vcvt.s32.f32 %v536
        %v545 = vcvt.s32.f32 %v537
        %v546 = vcvt.s32.f32 %v538
        %v547 = vcvt.s32.f32 %v539
        %v548 = vcvt.s32.f32 %v540
        %v549 = vcvt.s32.f32 %v541
        %v550 = vcvt.s32.f32 %v542
        %v551 = vld [vmem:[%s267] sm:$0xff]
        %v552 = vld [vmem:[%s267 + $0x8] sm:$0xff]
        %v553 = vld [vmem:[%s267 + $0x10] sm:$0xff]
        %v554 = vld [vmem:[%s267 + $0x18] sm:$0xff]
        %v555 = vld [vmem:[%s267 + $0x20] sm:$0xff]
        %v556 = vld [vmem:[%s267 + $0x28] sm:$0xff]
        %v557 = vld [vmem:[%s267 + $0x30] sm:$0xff]
        %v558 = vld [vmem:[%s267 + $0x38] sm:$0xff]
        %vm559 = vcmp.eq.f32.partialorder %v551, 0.0
        %vm560 = vcmp.eq.f32.partialorder %v552, 0.0
        %vm561 = vcmp.eq.f32.partialorder %v553, 0.0
        %vm562 = vcmp.eq.f32.partialorder %v554, 0.0
        %vm563 = vcmp.eq.f32.partialorder %v555, 0.0
        %vm564 = vcmp.eq.f32.partialorder %v556, 0.0
        %vm565 = vcmp.eq.f32.partialorder %v557, 0.0
        %vm566 = vcmp.eq.f32.partialorder %v558, 0.0
        %v567 = vsel %vm559, 1, 0
        %v568 = vsel %vm560, 1, 0
        %v569 = vsel %vm561, 1, 0
        %v570 = vsel %vm562, 1, 0
        %v571 = vsel %vm563, 1, 0
        %v572 = vsel %vm564, 1, 0
        %v573 = vsel %vm565, 1, 0
        %v574 = vsel %vm566, 1, 0
        %v575 = vcvt.s32.f32 %v567
        %v576 = vcvt.s32.f32 %v568
        %v577 = vcvt.s32.f32 %v569
        %v578 = vcvt.s32.f32 %v570
        %v579 = vcvt.s32.f32 %v571
        %v580 = vcvt.s32.f32 %v572
        %v581 = vcvt.s32.f32 %v573
        %v582 = vcvt.s32.f32 %v574
        %vm583 = vcmp.eq.f32.partialorder %v551, 1.0
        %vm584 = vcmp.eq.f32.partialorder %v552, 1.0
        %vm585 = vcmp.eq.f32.partialorder %v553, 1.0
        %vm586 = vcmp.eq.f32.partialorder %v554, 1.0
        %vm587 = vcmp.eq.f32.partialorder %v555, 1.0
        %vm588 = vcmp.eq.f32.partialorder %v556, 1.0
        %vm589 = vcmp.eq.f32.partialorder %v557, 1.0
        %vm590 = vcmp.eq.f32.partialorder %v558, 1.0
        %v591 = vsel %vm583, 1, 0
        %v592 = vsel %vm584, 1, 0
        %v593 = vsel %vm585, 1, 0
        %v594 = vsel %vm586, 1, 0
        %v595 = vsel %vm587, 1, 0
        %v596 = vsel %vm588, 1, 0
        %v597 = vsel %vm589, 1, 0
        %v598 = vsel %vm590, 1, 0
        %v599 = vcvt.s32.f32 %v591
        %v600 = vcvt.s32.f32 %v592
        %v601 = vcvt.s32.f32 %v593
        %v602 = vcvt.s32.f32 %v594
        %v603 = vcvt.s32.f32 %v595
        %v604 = vcvt.s32.f32 %v596
        %v605 = vcvt.s32.f32 %v597
        %v606 = vcvt.s32.f32 %v598
        %v607 = vmul.f32 %v599, %v543
        %v608 = vmul.f32 %v600, %v544
        %v609 = vmul.f32 %v601, %v545
        %v610 = vmul.f32 %v602, %v546
        %v611 = vmul.f32 %v603, %v547
        %v612 = vmul.f32 %v604, %v548
        %v613 = vmul.f32 %v605, %v549
        %v614 = vmul.f32 %v606, %v550
        %v615 = vadd.f32 %v575, %v607
        %v616 = vadd.f32 %v576, %v608
        %v617 = vadd.f32 %v577, %v609
        %v618 = vadd.f32 %v578, %v610
        %v619 = vadd.f32 %v579, %v611
        %v620 = vadd.f32 %v580, %v612
        %v621 = vadd.f32 %v581, %v613
        %v622 = vadd.f32 %v582, %v614
        %v623 = vadd.f32 %v615, %v617
        %v624 = vadd.f32 %v623, %v619
        %v625 = vadd.f32 %v624, %v621
        %v626 = vrot.slane %v625, 4
        %v627 = vadd.f32 %v625, %v626
        %v628 = vrot.slane %v627, 2
        %v629 = vadd.f32 %v627, %v628
        %v630 = vrot.slane %v629, 1
        %v631 = vadd.f32 %v629, %v630
        %v632 = vadd.f32 %v616, %v618
        %v633 = vadd.f32 %v632, %v620
        %v634 = vadd.f32 %v633, %v622
        %v635 = vrot.slane %v634, 4
        %v636 = vadd.f32 %v634, %v635
        %v637 = vrot.slane %v636, 2
        %v638 = vadd.f32 %v636, %v637
        %v639 = vrot.slane %v638, 1
        %v640 = vadd.f32 %v638, %v639
        %v641 = vsub.f32 %v631, 32.0
        %v642 = vsub.f32 %v640, 32.0
        %v643 = vpow.pop %v641
        %v644 = vpow.pop %v642
        %v645 = vld [vmem:[%s308] sm:$0x3]
        %v646 = vlaneseq
        %v647 = vshrl.u32 %v646, 7
        %v648 = vsub.s32 0, %v647
        %v649 = vrot.slane %v645, %v648
        %v650 = vlaneseq
        %v651 = vshrl.u32 %v650, 7
        %v652 = vsub.s32 1, %v651
        %v653 = vrot.slane %v645, %v652
        %vm654 = vcmp.eq.s32.totalorder %v314, %v649
        %vm655 = vcmp.eq.s32.totalorder %v314, %v653
        %vm656 = vcmp.eq.s32.totalorder %v315, %v649
        %vm657 = vcmp.eq.s32.totalorder %v315, %v653
        %vm658 = vcmp.eq.s32.totalorder %v316, %v649
        %vm659 = vcmp.eq.s32.totalorder %v316, %v653
        %vm660 = vcmp.eq.s32.totalorder %v317, %v649
        %vm661 = vcmp.eq.s32.totalorder %v317, %v653
        %vm662 = vcmp.eq.s32.totalorder %v318, %v649
        %vm663 = vcmp.eq.s32.totalorder %v318, %v653
        %vm664 = vcmp.eq.s32.totalorder %v319, %v649
        %vm665 = vcmp.eq.s32.totalorder %v319, %v653
        %vm666 = vcmp.eq.s32.totalorder %v320, %v649
        %vm667 = vcmp.eq.s32.totalorder %v320, %v653
        %vm668 = vcmp.eq.s32.totalorder %v321, %v649
        %vm669 = vcmp.eq.s32.totalorder %v321, %v653
        %vm670 = vcmp.eq.s32.totalorder %v322, %v649
        %vm671 = vcmp.eq.s32.totalorder %v322, %v653
        %vm672 = vcmp.eq.s32.totalorder %v323, %v649
        %vm673 = vcmp.eq.s32.totalorder %v323, %v653
        %vm674 = vcmp.eq.s32.totalorder %v324, %v649
        %vm675 = vcmp.eq.s32.totalorder %v324, %v653
        %vm676 = vcmp.eq.s32.totalorder %v325, %v649
        %vm677 = vcmp.eq.s32.totalorder %v325, %v653
        %vm678 = vcmp.eq.s32.totalorder %v326, %v649
        %vm679 = vcmp.eq.s32.totalorder %v326, %v653
        %vm680 = vcmp.eq.s32.totalorder %v327, %v649
        %vm681 = vcmp.eq.s32.totalorder %v327, %v653
        %vm682 = vcmp.eq.s32.totalorder %v328, %v649
        %vm683 = vcmp.eq.s32.totalorder %v328, %v653
        %vm684 = vcmp.eq.s32.totalorder %v329, %v649
        %vm685 = vcmp.eq.s32.totalorder %v329, %v653
        %v686 = vsel %vm654, 1, 0
        %v687 = vsel %vm655, 1, 0
        %v688 = vsel %vm656, 1, 0
        %v689 = vsel %vm657, 1, 0
        %v690 = vsel %vm658, 1, 0
        %v691 = vsel %vm659, 1, 0
        %v692 = vsel %vm660, 1, 0
        %v693 = vsel %vm661, 1, 0
        %v694 = vsel %vm662, 1, 0
        %v695 = vsel %vm663, 1, 0
        %v696 = vsel %vm664, 1, 0
        %v697 = vsel %vm665, 1, 0
        %v698 = vsel %vm666, 1, 0
        %v699 = vsel %vm667, 1, 0
        %v700 = vsel %vm668, 1, 0
        %v701 = vsel %vm669, 1, 0
        %v702 = vsel %vm670, 1, 0
        %v703 = vsel %vm671, 1, 0
        %v704 = vsel %vm672, 1, 0
        %v705 = vsel %vm673, 1, 0
        %v706 = vsel %vm674, 1, 0
        %v707 = vsel %vm675, 1, 0
        %v708 = vsel %vm676, 1, 0
        %v709 = vsel %vm677, 1, 0
        %v710 = vsel %vm678, 1, 0
        %v711 = vsel %vm679, 1, 0
        %v712 = vsel %vm680, 1, 0
        %v713 = vsel %vm681, 1, 0
        %v714 = vsel %vm682, 1, 0
        %v715 = vsel %vm683, 1, 0
        %v716 = vsel %vm684, 1, 0
        %v717 = vsel %vm685, 1, 0
        %v718 = vcvt.s32.f32 %v686
        %v719 = vcvt.s32.f32 %v687
        %v720 = vcvt.s32.f32 %v688
        %v721 = vcvt.s32.f32 %v689
        %v722 = vcvt.s32.f32 %v690
        %v723 = vcvt.s32.f32 %v691
        %v724 = vcvt.s32.f32 %v692
        %v725 = vcvt.s32.f32 %v693
        %v726 = vcvt.s32.f32 %v694
        %v727 = vcvt.s32.f32 %v695
        %v728 = vcvt.s32.f32 %v696
        %v729 = vcvt.s32.f32 %v697
        %v730 = vcvt.s32.f32 %v698
        %v731 = vcvt.s32.f32 %v699
        %v732 = vcvt.s32.f32 %v700
        %v733 = vcvt.s32.f32 %v701
        %v734 = vcvt.s32.f32 %v702
        %v735 = vcvt.s32.f32 %v703
        %v736 = vcvt.s32.f32 %v704
        %v737 = vcvt.s32.f32 %v705
        %v738 = vcvt.s32.f32 %v706
        %v739 = vcvt.s32.f32 %v707
        %v740 = vcvt.s32.f32 %v708
        %v741 = vcvt.s32.f32 %v709
        %v742 = vcvt.s32.f32 %v710
        %v743 = vcvt.s32.f32 %v711
        %v744 = vcvt.s32.f32 %v712
        %v745 = vcvt.s32.f32 %v713
        %v746 = vcvt.s32.f32 %v714
        %v747 = vcvt.s32.f32 %v715
        %v748 = vcvt.s32.f32 %v716
        %v749 = vcvt.s32.f32 %v717
        %v750 = vld [vmem:[%s1] sm:$0xff]
        %v751 = vld [vmem:[%s1 + $0x8] sm:$0xff]
        %v752 = vld [vmem:[%s1 + $0x10] sm:$0xff]
        %v753 = vld [vmem:[%s1 + $0x18] sm:$0xff]
        %v754 = vld [vmem:[%s1 + $0x20] sm:$0xff]
        %v755 = vld [vmem:[%s1 + $0x28] sm:$0xff]
        %v756 = vld [vmem:[%s1 + $0x30] sm:$0xff]
        %v757 = vld [vmem:[%s1 + $0x38] sm:$0xff]
        %v758 = vld [vmem:[%s1 + $0x40] sm:$0xff]
        %v759 = vld [vmem:[%s1 + $0x48] sm:$0xff]
        %v760 = vld [vmem:[%s1 + $0x50] sm:$0xff]
        %v761 = vld [vmem:[%s1 + $0x58] sm:$0xff]
        %v762 = vld [vmem:[%s1 + $0x60] sm:$0xff]
        %v763 = vld [vmem:[%s1 + $0x68] sm:$0xff]
        %v764 = vld [vmem:[%s1 + $0x70] sm:$0xff]
        %v765 = vld [vmem:[%s1 + $0x78] sm:$0xff]
        %767 = vset.pattern.permute.xlu0 0
        %768 = vperm.xlu0 %767, %v750
        %v769 = vpop.permute.xlu0 %768
        %772 = vset.pattern.permute.xlu0 0
        %773 = vperm.xlu0 %772, %v751
        %v774 = vpop.permute.xlu0 %773
        %777 = vset.pattern.permute.xlu0 0
        %778 = vperm.xlu0 %777, %v752
        %v779 = vpop.permute.xlu0 %778
        %782 = vset.pattern.permute.xlu0 0
        %783 = vperm.xlu0 %782, %v753
        %v784 = vpop.permute.xlu0 %783
        %787 = vset.pattern.permute.xlu0 0
        %788 = vperm.xlu0 %787, %v754
        %v789 = vpop.permute.xlu0 %788
        %792 = vset.pattern.permute.xlu0 0
        %793 = vperm.xlu0 %792, %v755
        %v794 = vpop.permute.xlu0 %793
        %797 = vset.pattern.permute.xlu0 0
        %798 = vperm.xlu0 %797, %v756
        %v799 = vpop.permute.xlu0 %798
        %802 = vset.pattern.permute.xlu0 0
        %803 = vperm.xlu0 %802, %v757
        %v804 = vpop.permute.xlu0 %803
        %807 = vset.pattern.permute.xlu0 0
        %808 = vperm.xlu0 %807, %v758
        %v809 = vpop.permute.xlu0 %808
        %812 = vset.pattern.permute.xlu0 0
        %813 = vperm.xlu0 %812, %v759
        %v814 = vpop.permute.xlu0 %813
        %817 = vset.pattern.permute.xlu0 0
        %818 = vperm.xlu0 %817, %v760
        %v819 = vpop.permute.xlu0 %818
        %822 = vset.pattern.permute.xlu0 0
        %823 = vperm.xlu0 %822, %v761
        %v824 = vpop.permute.xlu0 %823
        %827 = vset.pattern.permute.xlu0 0
        %828 = vperm.xlu0 %827, %v762
        %v829 = vpop.permute.xlu0 %828
        %832 = vset.pattern.permute.xlu0 0
        %833 = vperm.xlu0 %832, %v763
        %v834 = vpop.permute.xlu0 %833
        %837 = vset.pattern.permute.xlu0 0
        %838 = vperm.xlu0 %837, %v764
        %v839 = vpop.permute.xlu0 %838
        %842 = vset.pattern.permute.xlu0 0
        %843 = vperm.xlu0 %842, %v765
        %v844 = vpop.permute.xlu0 %843
        %v846 = vmul.f32 %v718, %v769
        %v847 = vmul.f32 %v719, %v769
        %v848 = vmul.f32 %v720, %v774
        %v849 = vmul.f32 %v721, %v774
        %v850 = vmul.f32 %v722, %v779
        %v851 = vmul.f32 %v723, %v779
        %v852 = vmul.f32 %v724, %v784
        %v853 = vmul.f32 %v725, %v784
        %v854 = vmul.f32 %v726, %v789
        %v855 = vmul.f32 %v727, %v789
        %v856 = vmul.f32 %v728, %v794
        %v857 = vmul.f32 %v729, %v794
        %v858 = vmul.f32 %v730, %v799
        %v859 = vmul.f32 %v731, %v799
        %v860 = vmul.f32 %v732, %v804
        %v861 = vmul.f32 %v733, %v804
        %v862 = vmul.f32 %v734, %v809
        %v863 = vmul.f32 %v735, %v809
        %v864 = vmul.f32 %v736, %v814
        %v865 = vmul.f32 %v737, %v814
        %v866 = vmul.f32 %v738, %v819
        %v867 = vmul.f32 %v739, %v819
        %v868 = vmul.f32 %v740, %v824
        %v869 = vmul.f32 %v741, %v824
        %v870 = vmul.f32 %v742, %v829
        %v871 = vmul.f32 %v743, %v829
        %v872 = vmul.f32 %v744, %v834
        %v873 = vmul.f32 %v745, %v834
        %v874 = vmul.f32 %v746, %v839
        %v875 = vmul.f32 %v747, %v839
        %v876 = vmul.f32 %v748, %v844
        %v877 = vmul.f32 %v749, %v844
        %v878 = vadd.f32 %v846, %v848
        %v879 = vadd.f32 %v878, %v850
        %v880 = vadd.f32 %v879, %v852
        %v881 = vadd.f32 %v880, %v854
        %v882 = vadd.f32 %v881, %v856
        %v883 = vadd.f32 %v882, %v858
        %v884 = vadd.f32 %v883, %v860
        %v885 = vadd.f32 %v884, %v862
        %v886 = vadd.f32 %v885, %v864
        %v887 = vadd.f32 %v886, %v866
        %v888 = vadd.f32 %v887, %v868
        %v889 = vadd.f32 %v888, %v870
        %v890 = vadd.f32 %v889, %v872
        %v891 = vadd.f32 %v890, %v874
        %v892 = vadd.f32 %v891, %v876
        %v893 = vrot.slane %v892, 4
        %v894 = vadd.f32 %v892, %v893
        %v895 = vrot.slane %v894, 2
        %v896 = vadd.f32 %v894, %v895
        %v897 = vrot.slane %v896, 1
        %v898 = vadd.f32 %v896, %v897
        %v899 = vadd.f32 %v847, %v849
        %v900 = vadd.f32 %v899, %v851
        %v901 = vadd.f32 %v900, %v853
        %v902 = vadd.f32 %v901, %v855
        %v903 = vadd.f32 %v902, %v857
        %v904 = vadd.f32 %v903, %v859
        %v905 = vadd.f32 %v904, %v861
        %v906 = vadd.f32 %v905, %v863
        %v907 = vadd.f32 %v906, %v865
        %v908 = vadd.f32 %v907, %v867
        %v909 = vadd.f32 %v908, %v869
        %v910 = vadd.f32 %v909, %v871
        %v911 = vadd.f32 %v910, %v873
        %v912 = vadd.f32 %v911, %v875
        %v913 = vadd.f32 %v912, %v877
        %v914 = vrot.slane %v913, 4
        %v915 = vadd.f32 %v913, %v914
        %v916 = vrot.slane %v915, 2
        %v917 = vadd.f32 %v915, %v916
        %v918 = vrot.slane %v917, 1
        %v919 = vadd.f32 %v917, %v918
        %920 = vset.pattern.permute.xlu0 1
        %921 = vperm.xlu0 %920, %v750
        %v922 = vpop.permute.xlu0 %921
        %924 = vset.pattern.permute.xlu0 1
        %925 = vperm.xlu0 %924, %v751
        %v926 = vpop.permute.xlu0 %925
        %928 = vset.pattern.permute.xlu0 1
        %929 = vperm.xlu0 %928, %v752
        %v930 = vpop.permute.xlu0 %929
        %932 = vset.pattern.permute.xlu0 1
        %933 = vperm.xlu0 %932, %v753
        %v934 = vpop.permute.xlu0 %933
        %936 = vset.pattern.permute.xlu0 1
        %937 = vperm.xlu0 %936, %v754
        %v938 = vpop.permute.xlu0 %937
        %940 = vset.pattern.permute.xlu0 1
        %941 = vperm.xlu0 %940, %v755
        %v942 = vpop.permute.xlu0 %941
        %944 = vset.pattern.permute.xlu0 1
        %945 = vperm.xlu0 %944, %v756
        %v946 = vpop.permute.xlu0 %945
        %948 = vset.pattern.permute.xlu0 1
        %949 = vperm.xlu0 %948, %v757
        %v950 = vpop.permute.xlu0 %949
        %952 = vset.pattern.permute.xlu0 1
        %953 = vperm.xlu0 %952, %v758
        %v954 = vpop.permute.xlu0 %953
        %956 = vset.pattern.permute.xlu0 1
        %957 = vperm.xlu0 %956, %v759
        %v958 = vpop.permute.xlu0 %957
        %960 = vset.pattern.permute.xlu0 1
        %961 = vperm.xlu0 %960, %v760
        %v962 = vpop.permute.xlu0 %961
        %964 = vset.pattern.permute.xlu0 1
        %965 = vperm.xlu0 %964, %v761
        %v966 = vpop.permute.xlu0 %965
        %968 = vset.pattern.permute.xlu0 1
        %969 = vperm.xlu0 %968, %v762
        %v970 = vpop.permute.xlu0 %969
        %972 = vset.pattern.permute.xlu0 1
        %973 = vperm.xlu0 %972, %v763
        %v974 = vpop.permute.xlu0 %973
        %976 = vset.pattern.permute.xlu0 1
        %977 = vperm.xlu0 %976, %v764
        %v978 = vpop.permute.xlu0 %977
        %980 = vset.pattern.permute.xlu0 1
        %981 = vperm.xlu0 %980, %v765
        %v982 = vpop.permute.xlu0 %981
        %v984 = vmul.f32 %v718, %v922
        %v985 = vmul.f32 %v719, %v922
        %v986 = vmul.f32 %v720, %v926
        %v987 = vmul.f32 %v721, %v926
        %v988 = vmul.f32 %v722, %v930
        %v989 = vmul.f32 %v723, %v930
        %v990 = vmul.f32 %v724, %v934
        %v991 = vmul.f32 %v725, %v934
        %v992 = vmul.f32 %v726, %v938
        %v993 = vmul.f32 %v727, %v938
        %v994 = vmul.f32 %v728, %v942
        %v995 = vmul.f32 %v729, %v942
        %v996 = vmul.f32 %v730, %v946
        %v997 = vmul.f32 %v731, %v946
        %v998 = vmul.f32 %v732, %v950
        %v999 = vmul.f32 %v733, %v950
        %v1000 = vmul.f32 %v734, %v954
        %v1001 = vmul.f32 %v735, %v954
        %v1002 = vmul.f32 %v736, %v958
        %v1003 = vmul.f32 %v737, %v958
        %v1004 = vmul.f32 %v738, %v962
        %v1005 = vmul.f32 %v739, %v962
        %v1006 = vmul.f32 %v740, %v966
        %v1007 = vmul.f32 %v741, %v966
        %v1008 = vmul.f32 %v742, %v970
        %v1009 = vmul.f32 %v743, %v970
        %v1010 = vmul.f32 %v744, %v974
        %v1011 = vmul.f32 %v745, %v974
        %v1012 = vmul.f32 %v746, %v978
        %v1013 = vmul.f32 %v747, %v978
        %v1014 = vmul.f32 %v748, %v982
        %v1015 = vmul.f32 %v749, %v982
        %v1016 = vadd.f32 %v984, %v986
        %v1017 = vadd.f32 %v1016, %v988
        %v1018 = vadd.f32 %v1017, %v990
        %v1019 = vadd.f32 %v1018, %v992
        %v1020 = vadd.f32 %v1019, %v994
        %v1021 = vadd.f32 %v1020, %v996
        %v1022 = vadd.f32 %v1021, %v998
        %v1023 = vadd.f32 %v1022, %v1000
        %v1024 = vadd.f32 %v1023, %v1002
        %v1025 = vadd.f32 %v1024, %v1004
        %v1026 = vadd.f32 %v1025, %v1006
        %v1027 = vadd.f32 %v1026, %v1008
        %v1028 = vadd.f32 %v1027, %v1010
        %v1029 = vadd.f32 %v1028, %v1012
        %v1030 = vadd.f32 %v1029, %v1014
        %v1031 = vrot.slane %v1030, 4
        %v1032 = vadd.f32 %v1030, %v1031
        %v1033 = vrot.slane %v1032, 2
        %v1034 = vadd.f32 %v1032, %v1033
        %v1035 = vrot.slane %v1034, 1
        %v1036 = vadd.f32 %v1034, %v1035
        %v1037 = vadd.f32 %v985, %v987
        %v1038 = vadd.f32 %v1037, %v989
        %v1039 = vadd.f32 %v1038, %v991
        %v1040 = vadd.f32 %v1039, %v993
        %v1041 = vadd.f32 %v1040, %v995
        %v1042 = vadd.f32 %v1041, %v997
        %v1043 = vadd.f32 %v1042, %v999
        %v1044 = vadd.f32 %v1043, %v1001
        %v1045 = vadd.f32 %v1044, %v1003
        %v1046 = vadd.f32 %v1045, %v1005
        %v1047 = vadd.f32 %v1046, %v1007
        %v1048 = vadd.f32 %v1047, %v1009
        %v1049 = vadd.f32 %v1048, %v1011
        %v1050 = vadd.f32 %v1049, %v1013
        %v1051 = vadd.f32 %v1050, %v1015
        %v1052 = vrot.slane %v1051, 4
        %v1053 = vadd.f32 %v1051, %v1052
        %v1054 = vrot.slane %v1053, 2
        %v1055 = vadd.f32 %v1053, %v1054
        %v1056 = vrot.slane %v1055, 1
        %v1057 = vadd.f32 %v1055, %v1056
        %v1058 = vxor.u32 %v898, 2147483648
        %v1059 = vxor.u32 %v919, 2147483648
        %v1060 = vmul.f32 %v1058, 1.442695
        %v1061 = vpow.pop %v1060
        %v1062 = vmul.f32 %v1059, 1.442695
        %v1063 = vpow.pop %v1062
        %v1064 = vadd.f32 %v1061, 1.0
        %v1065 = vadd.f32 %v1063, 1.0
        %v1066 = vrcp.pop %v1064
        %v1067 = vmul.f32 1.0, %v1066
        %v1068 = vrcp.pop %v1065
        %v1069 = vmul.f32 1.0, %v1068
        %v1070 = vmul.f32 %v1067, 0.4
        %v1071 = vmul.f32 %v1069, 0.4
        %v1072 = vxor.u32 %v1036, 2147483648
        %v1073 = vxor.u32 %v1057, 2147483648
        %v1074 = vmul.f32 %v1072, 1.442695
        %v1075 = vpow.pop %v1074
        %v1076 = vmul.f32 %v1073, 1.442695
        %v1077 = vpow.pop %v1076
        %v1078 = vadd.f32 %v1075, 1.0
        %v1079 = vadd.f32 %v1077, 1.0
        %v1080 = vrcp.pop %v1078
        %v1081 = vmul.f32 1.0, %v1080
        %v1082 = vrcp.pop %v1079
        %v1083 = vmul.f32 1.0, %v1082
        %v1084 = vmul.f32 %v1081, 0.4
        %v1085 = vmul.f32 %v1083, 0.4
        %v1086 = vsub.f32 1.0, %v1070
        %v1087 = vsub.f32 1.0, %v1071
        %v1088 = vlog2.pop %v1086
        %v1089 = vmul.f32 %v1088, 0.6931472
        %v1090 = vlog2.pop %v1087
        %v1091 = vmul.f32 %v1090, 0.6931472
        %v1092 = vmul.f32 %v643, %v1089
        %v1093 = vmul.f32 %v644, %v1091
        %v1094 = vsub.f32 1.0, %v643
        %v1095 = vsub.f32 1.0, %v644
        %v1096 = vlog2.pop %v1084
        %v1097 = vmul.f32 %v1096, 0.6931472
        %v1098 = vlog2.pop %v1085
        %v1099 = vmul.f32 %v1098, 0.6931472
        %v1100 = vmul.f32 %v1094, %v1097
        %v1101 = vmul.f32 %v1095, %v1099
        %v1102 = vadd.f32 %v1092, %v1100
        %v1103 = vadd.f32 %v1093, %v1101
        %v1104 = vmul.f32 %v1102, 1.442695
        %v1105 = vpow.pop %v1104
        %v1106 = vmul.f32 %v1103, 1.442695
        %v1107 = vpow.pop %v1106
        %v1110 = vcombine.low %v1105, %v1107
        %v1112 = vunpack.c.l.s4 1966171168
        %v1113 = vunpack.c.0.s8 %v1112
        %v1114 = vlaneseq
        %v1115 = vshrl.u32 %v1114, 7
        %v1116 = vsub.s32 %v1113, %v1115
        %v1117 = vrot.slane %v1110, %v1116
        %v1119 = vunpack.c.l.s4 1966171168
        %v1120 = vunpack.c.0.s8 %v1119
        %v1121 = vlaneseq
        %v1122 = vshrl.u32 %v1121, 7
        %v1123 = vsub.s32 %v1120, %v1122
        %v1124 = vrot.slane %v1117, %v1123
        %v1126 = vlaneseq
        %vm1127 = vcmp.ge.s32.totalorder %v1126, 0
        %vm1128 = vcmp.lt.s32.totalorder %v1126, 256
        %vm1129 = vmand %vm1127, %vm1128
        %1130 = vst.msk [vmem:[%s299] sm:$0x3] %vm1129, %v1124
        %s1131 = sand.u32 %s148, 1
        %s1132 = scalar_lea.sflag [#allocation4], %s1131
        %s1133 = sand.u32 %s148, 1
        %s1134 = smul.addr %s1133, 2
        %s1135 = scalar_lea.vmem [#allocation6], %s1134
        // Predicated region
        $region68: #{tpu_custom_call.1} parent=58 // pred_check
          %p1136 = pneg %p158
        $region69: #{tpu_custom_call.1} parent=58 // pred_check_branch
          %1138 = sbr.rel (%p1136) target = $region71
        $region70: #{tpu_custom_call.1} parent=58 // pred_region
          %s1139 = smul.u32 2, %s20
          %s1141 = ssub.s32 32, 32
          %1142 = vsyncadd %s1132, %s1141
          %s1143 = smul.addr %s1139, 16
          %s1144 = scalar_lea.hbm %s5, %s1143
          %s1146 = sshll.u32 %s1135, 4
          %s1147 = int_to_ptr.vmem [resolvable:$true] %s1146
          %1149 = dma.vmem_to_hbm [thread:$0]  %s1147, 32, %s1144, %s1132
        $region71: #{tpu_custom_call.1} parent=58 // pred_fallthru
          _
      $region59: #{tpu_custom_call.1} parent=5 // pred_fallthru
        _
      %p1150 = scmp.le.s32.totalorder 2, %s15
      // Predicated region
      $region72: #{tpu_custom_call.1} parent=5 // pred_check
        %p1151 = pneg %p1150
      $region73: #{tpu_custom_call.1} parent=5 // pred_check_branch
        %1153 = sbr.rel (%p1151) target = $region75
      $region74: #{tpu_custom_call.1} parent=5 // pred_region
        %s1154 = ssub.s32 %s15, 2
        // Predicated region
        $region76: #{tpu_custom_call.1} parent=74 // pred_check
          %p1155 = pneg %p164
        $region77: #{tpu_custom_call.1} parent=74 // pred_check_branch
          %1157 = sbr.rel (%p1155) target = $region79
        $region78: #{tpu_custom_call.1} parent=74 // pred_region
          %s1158 = sand.u32 %s149, 1
          %s1159 = scalar_lea.sflag [#allocation4], %s1158
          %s1160 = sand.u32 %s149, 1
          %s1161 = smul.addr %s1160, 2
          %s1162 = scalar_lea.vmem [#allocation6], %s1161
          %1163 = dma.done %s1159, 32
        $region79: #{tpu_custom_call.1} parent=74 // pred_fallthru
          _
      $region75: #{tpu_custom_call.1} parent=5 // pred_fallthru
        _
    $region6: #{tpu_custom_call.1} parent=1 // loop_footer
      %s19 = sadd.s32 1, %s15
    $region7: #{tpu_custom_call.1} parent=1 // loop_footer_branch
      %14 = sbr.rel target = $region3
    $region8: #{tpu_custom_call.1} parent=1 // loop_exit
      _
    %1164 = vsyncpa [#allocation3], 1
    %s1165 = scalar_lea.sflag [#allocation3], 1
    %1166 = vsyncpa %s1165, 1
    %1167 = vsyncpa [#allocation4], 1
    %s1168 = scalar_lea.sflag [#allocation4], 1
    %1169 = vsyncpa %s1168, 1

</llo_original>
